<compile_context>
chip_gen: v6e
topology: v6e:2x2x1
jax: 0.10.0
libtpu: 0.0.40
codegen_flags: <defaults>
</compile_context>

<pallas_src>
import functools

import jax
import jax.numpy as jnp
from jax.experimental import pallas as pl
from jax.experimental.pallas import tpu as pltpu

_BN_EPS = 1e-5     # nn.BatchNorm1d default
_NORM_EPS = 1e-12  # F.normalize default


def _lane_pad(d):
    # round a feature dim up to a lane-dense width (multiple of 128)
    return max(128, ((d + 127) // 128) * 128)


# ---------------------------------------------------------------------------
# Fused kernel: backbone + projection head + cluster head + self-labeling head
# ---------------------------------------------------------------------------
def _network_kernel(img_ref, wr_ref, br_ref,
                    pw1_ref, pg1_ref, pbe1_ref, pw2_ref, pg2_ref, pbe2_ref,
                    pw3_ref, pb3_ref,
                    cw1_ref, cg1_ref, cbe1_ref, cw2_ref, cg2_ref, cbe2_ref,
                    cw3_ref, cb3_ref,
                    sw_ref, sb_ref,
                    z_ref, p_ref, u_ref,
                    *, n_front):
    f32 = jnp.float32
    bf16 = jnp.bfloat16

    # --- stand-in resnet backbone: flatten (done in wrapper) + linear --------
    # TODO(synk): `resnet` is an externally injected backbone in the PyTorch
    # module; here it is a deterministic flatten+linear stand-in.  A real
    # backbone / large dim_in would need a K-gridded accumulator pattern
    # (tiles sized for v7x's 64 MiB VMEM) instead of whole-array residency.
    x = jnp.dot(img_ref[...].astype(bf16), wr_ref[...],
                preferred_element_type=f32) + br_ref[...]          # (B, dim_in) f32
    x16 = x.astype(bf16)

    def bn_relu(h, g_ref, be_ref):
        # nn.BatchNorm1d training mode: biased batch statistics, fused FMA form.
        mean = jnp.mean(h, axis=0, keepdims=True)
        var = jnp.mean((h - mean) ** 2, axis=0, keepdims=True)
        scale = g_ref[...] * jax.lax.rsqrt(var + _BN_EPS)
        shift = be_ref[...] - mean * scale
        return jnp.maximum(h * scale + shift, 0.0)

    def mlp_trunk(w1_ref, g1_ref, be1_ref, w2_ref, g2_ref, be2_ref):
        # Linear(no bias; it cancels under BN) -> BN -> ReLU, twice.
        h = bn_relu(jnp.dot(x16, w1_ref[...], preferred_element_type=f32),
                    g1_ref, be1_ref)
        h = bn_relu(jnp.dot(h.astype(bf16), w2_ref[...], preferred_element_type=f32),
                    g2_ref, be2_ref)
        return h  # f32, (B, dim_in)

    # --- projection head + F.normalize(dim=1) --------------------------------
    hp = mlp_trunk(pw1_ref, pg1_ref, pbe1_ref, pw2_ref, pg2_ref, pbe2_ref)
    z = jnp.dot(hp.astype(bf16), pw3_ref[...], preferred_element_type=f32) + pb3_ref[...]
    # padded columns of z are exactly zero, so the norm is unaffected.
    inv = jnp.minimum(jax.lax.rsqrt(jnp.sum(z * z, axis=1, keepdims=True)),
                      1.0 / _NORM_EPS)   # == 1 / clamp_min(||z||, 1e-12)
    z_ref[...] = z * inv

    # --- cluster head: full-batch BN stats, only rows [:N] are emitted -------
    hc = mlp_trunk(cw1_ref, cg1_ref, cbe1_ref, cw2_ref, cg2_ref, cbe2_ref)
    p_ref[...] = jnp.dot(hc[:n_front].astype(bf16), cw3_ref[...],
                         preferred_element_type=f32) + cb3_ref[...]

    # --- self-labeling head: pure linear, compute only rows [N:] -------------
    u_ref[...] = jnp.dot(x[n_front:].astype(bf16), sw_ref[...],
                         preferred_element_type=f32) + sb_ref[...]


# ---------------------------------------------------------------------------
# Wrapper (all operands fit comfortably in VMEM at these sizes -> no grid)
# ---------------------------------------------------------------------------
@functools.partial(jax.jit, static_argnames=("feature_dim", "class_dim"))
def network_forward(img, params, *, feature_dim, class_dim):
    B = img.shape[0]
    N = B // 2
    img_flat = img.reshape(B, -1)                     # f32 in HBM; cast to bf16 in-VMEM

    flat_params = (params["resnet"]
                   + params["projection_head"]
                   + params["cluster_head"]
                   + params["self_labeling_head"])    # 20 arrays

    feat_pad = params["projection_head"][6].shape[1]
    class_pad = params["cluster_head"][6].shape[1]

    kernel = functools.partial(_network_kernel, n_front=N)
    vmem = pl.BlockSpec(memory_space=pltpu.MemorySpace.VMEM)

    z_pad, p_pad, u_pad = pl.pallas_call(
        kernel,
        out_shape=(
            jax.ShapeDtypeStruct((B, feat_pad), jnp.float32),
            jax.ShapeDtypeStruct((N, class_pad), jnp.float32),
            jax.ShapeDtypeStruct((B - N, class_pad), jnp.float32),
        ),
        in_specs=[vmem] * (1 + len(flat_params)),
        out_specs=(vmem, vmem, vmem),
    )(img_flat, *flat_params)

    return (z_pad[:, :feature_dim],
            p_pad[:, :class_dim],
            u_pad[:, :class_dim])


# ---------------------------------------------------------------------------
# Parameter construction (deterministic, PyTorch-style uniform init)
# ---------------------------------------------------------------------------
def _init_linear(key, fan_in, fan_out, pad_out=None):
    kw, kb = jax.random.split(key)
    bound = 1.0 / float(fan_in) ** 0.5
    w = jax.random.uniform(kw, (fan_in, fan_out), jnp.float32, -bound, bound)
    b = jax.random.uniform(kb, (1, fan_out), jnp.float32, -bound, bound)
    if pad_out is not None and pad_out > fan_out:
        w = jnp.pad(w, ((0, 0), (0, pad_out - fan_out)))
        b = jnp.pad(b, ((0, 0), (0, pad_out - fan_out)))
    # weights feed the MXU in bf16; biases are added after f32 accumulation.
    return w.astype(jnp.bfloat16), b


def _init_bn(dim):
    # PyTorch defaults: gamma = 1, beta = 0
    return jnp.ones((1, dim), jnp.float32), jnp.zeros((1, dim), jnp.float32)


def _init_head(key, dim_in, out_dim, pad_out):
    k1, k2, k3 = jax.random.split(key, 3)
    # Linear biases before training-mode BatchNorm cancel exactly -> dropped.
    w1, _ = _init_linear(k1, dim_in, dim_in)
    g1, be1 = _init_bn(dim_in)
    w2, _ = _init_linear(k2, dim_in, dim_in)
    g2, be2 = _init_bn(dim_in)
    w3, b3 = _init_linear(k3, dim_in, out_dim, pad_out=pad_out)
    return (w1, g1, be1, w2, g2, be2, w3, b3)


def init_network_params(key, img_shape, dim_in, class_dim, feature_dim):
    _, c, h, w = img_shape
    k_res, k_proj, k_clu, k_slf = jax.random.split(key, 4)
    feat_pad = _lane_pad(feature_dim)
    class_pad = _lane_pad(class_dim)
    return {
        "resnet": _init_linear(k_res, c * h * w, dim_in),
        "projection_head": _init_head(k_proj, dim_in, feature_dim, feat_pad),
        "cluster_head": _init_head(k_clu, dim_in, class_dim, class_pad),
        "self_labeling_head": _init_linear(k_slf, dim_in, class_dim, pad_out=class_pad),
    }


if __name__ == "__main__":
    key = jax.random.PRNGKey(0)
    k_img, k_par = jax.random.split(key)

    B, C, H, W = 8, 3, 16, 16          # batch must be even (N = B // 2)
    dim_in, feature_dim, class_dim = 32, 16, 8

    img = jax.random.normal(k_img, (B, C, H, W), jnp.float32)
    params = init_network_params(k_par, (B, C, H, W), dim_in, class_dim, feature_dim)

    z, p_head, u_tail = network_forward(img, params,
                                        feature_dim=feature_dim, class_dim=class_dim)
    jax.block_until_ready((z, p_head, u_tail))

    assert z.shape == (B, feature_dim)
    assert p_head.shape == (B // 2, class_dim)
    assert u_tail.shape == (B - B // 2, class_dim)
    print("KERNEL_OK")
</pallas_src>

<mosaic_0001>
module attributes {stable_mosaic.version = 11 : i64} {
  func.func @_network_kernel(%arg0: memref<8x768xf32, #tpu.memory_space<vmem>>, %arg1: memref<768x32xbf16, #tpu.memory_space<vmem>>, %arg2: memref<1x32xf32, #tpu.memory_space<vmem>>, %arg3: memref<32x32xbf16, #tpu.memory_space<vmem>>, %arg4: memref<1x32xf32, #tpu.memory_space<vmem>>, %arg5: memref<1x32xf32, #tpu.memory_space<vmem>>, %arg6: memref<32x32xbf16, #tpu.memory_space<vmem>>, %arg7: memref<1x32xf32, #tpu.memory_space<vmem>>, %arg8: memref<1x32xf32, #tpu.memory_space<vmem>>, %arg9: memref<32x128xbf16, #tpu.memory_space<vmem>>, %arg10: memref<1x128xf32, #tpu.memory_space<vmem>>, %arg11: memref<32x32xbf16, #tpu.memory_space<vmem>>, %arg12: memref<1x32xf32, #tpu.memory_space<vmem>>, %arg13: memref<1x32xf32, #tpu.memory_space<vmem>>, %arg14: memref<32x32xbf16, #tpu.memory_space<vmem>>, %arg15: memref<1x32xf32, #tpu.memory_space<vmem>>, %arg16: memref<1x32xf32, #tpu.memory_space<vmem>>, %arg17: memref<32x128xbf16, #tpu.memory_space<vmem>>, %arg18: memref<1x128xf32, #tpu.memory_space<vmem>>, %arg19: memref<32x128xbf16, #tpu.memory_space<vmem>>, %arg20: memref<1x128xf32, #tpu.memory_space<vmem>>, %arg21: memref<8x128xf32, #tpu.memory_space<vmem>>, %arg22: memref<4x128xf32, #tpu.memory_space<vmem>>, %arg23: memref<4x128xf32, #tpu.memory_space<vmem>>) attributes {dimension_semantics = [], scalar_prefetch = 0 : i64, scratch_operands = 0 : i64, tpu.core_type = #tpu.core_type<tc>} {
    %c0 = arith.constant 0 : index
    %c0_0 = arith.constant 0 : index
    %0 = vector.load %arg0[%c0, %c0_0] : memref<8x768xf32, #tpu.memory_space<vmem>>, vector<8x768xf32>
    %1 = arith.truncf %0 : vector<8x768xf32> to vector<8x768xbf16>
    %c0_1 = arith.constant 0 : index
    %c0_2 = arith.constant 0 : index
    %2 = vector.load %arg1[%c0_1, %c0_2] : memref<768x32xbf16, #tpu.memory_space<vmem>>, vector<768x32xbf16>
    %cst = arith.constant dense<0.000000e+00> : vector<8x32xf32>
    %3 = tpu.matmul %1, %2, %cst {dimension_numbers = #tpu.dot_dimension_numbers<[1], [0], [0], [1], [0, 0, 1, 1], [], []>} : vector<8x768xbf16>, vector<768x32xbf16>, vector<8x32xf32> -> vector<8x32xf32>
    %c0_3 = arith.constant 0 : index
    %c0_4 = arith.constant 0 : index
    %4 = vector.load %arg2[%c0_3, %c0_4] : memref<1x32xf32, #tpu.memory_space<vmem>>, vector<1x32xf32>
    %5 = vector.broadcast %4 : vector<1x32xf32> to vector<8x32xf32>
    %6 = arith.addf %3, %5 : vector<8x32xf32>
    %7 = arith.truncf %6 : vector<8x32xf32> to vector<8x32xbf16>
    %c0_5 = arith.constant 0 : index
    %c0_6 = arith.constant 0 : index
    %8 = vector.load %arg3[%c0_5, %c0_6] : memref<32x32xbf16, #tpu.memory_space<vmem>>, vector<32x32xbf16>
    %cst_7 = arith.constant dense<0.000000e+00> : vector<8x32xf32>
    %9 = tpu.matmul %7, %8, %cst_7 {dimension_numbers = #tpu.dot_dimension_numbers<[1], [0], [0], [1], [0, 0, 1, 1], [], []>} : vector<8x32xbf16>, vector<32x32xbf16>, vector<8x32xf32> -> vector<8x32xf32>
    %cst_8 = arith.constant dense<0.000000e+00> : vector<32xf32>
    %10 = vector.multi_reduction <add>, %9, %cst_8 [0] : vector<8x32xf32> to vector<32xf32>
    %11 = vector.shape_cast %10 : vector<32xf32> to vector<1x32xf32>
    %cst_9 = arith.constant 8.000000e+00 : f32
    %12 = vector.broadcast %cst_9 : f32 to vector<1x32xf32>
    %13 = arith.divf %11, %12 : vector<1x32xf32>
    %14 = vector.broadcast %13 : vector<1x32xf32> to vector<8x32xf32>
    %15 = arith.subf %9, %14 : vector<8x32xf32>
    %16 = arith.mulf %15, %15 : vector<8x32xf32>
    %cst_10 = arith.constant dense<0.000000e+00> : vector<32xf32>
    %17 = vector.multi_reduction <add>, %16, %cst_10 [0] : vector<8x32xf32> to vector<32xf32>
    %18 = vector.shape_cast %17 : vector<32xf32> to vector<1x32xf32>
    %cst_11 = arith.constant 8.000000e+00 : f32
    %19 = vector.broadcast %cst_11 : f32 to vector<1x32xf32>
    %20 = arith.divf %18, %19 : vector<1x32xf32>
    %c0_12 = arith.constant 0 : index
    %c0_13 = arith.constant 0 : index
    %21 = vector.load %arg4[%c0_12, %c0_13] : memref<1x32xf32, #tpu.memory_space<vmem>>, vector<1x32xf32>
    %cst_14 = arith.constant 9.99999974E-6 : f32
    %22 = vector.broadcast %cst_14 : f32 to vector<1x32xf32>
    %23 = arith.addf %20, %22 : vector<1x32xf32>
    %24 = math.rsqrt %23 : vector<1x32xf32>
    %25 = arith.mulf %21, %24 : vector<1x32xf32>
    %c0_15 = arith.constant 0 : index
    %c0_16 = arith.constant 0 : index
    %26 = vector.load %arg5[%c0_15, %c0_16] : memref<1x32xf32, #tpu.memory_space<vmem>>, vector<1x32xf32>
    %27 = arith.mulf %13, %25 : vector<1x32xf32>
    %28 = arith.subf %26, %27 : vector<1x32xf32>
    %29 = vector.broadcast %25 : vector<1x32xf32> to vector<8x32xf32>
    %30 = arith.mulf %9, %29 : vector<8x32xf32>
    %31 = vector.broadcast %28 : vector<1x32xf32> to vector<8x32xf32>
    %32 = arith.addf %30, %31 : vector<8x32xf32>
    %cst_17 = arith.constant 0.000000e+00 : f32
    %33 = vector.broadcast %cst_17 : f32 to vector<8x32xf32>
    %34 = arith.maximumf %32, %33 : vector<8x32xf32>
    %35 = arith.truncf %34 : vector<8x32xf32> to vector<8x32xbf16>
    %c0_18 = arith.constant 0 : index
    %c0_19 = arith.constant 0 : index
    %36 = vector.load %arg6[%c0_18, %c0_19] : memref<32x32xbf16, #tpu.memory_space<vmem>>, vector<32x32xbf16>
    %cst_20 = arith.constant dense<0.000000e+00> : vector<8x32xf32>
    %37 = tpu.matmul %35, %36, %cst_20 {dimension_numbers = #tpu.dot_dimension_numbers<[1], [0], [0], [1], [0, 0, 1, 1], [], []>} : vector<8x32xbf16>, vector<32x32xbf16>, vector<8x32xf32> -> vector<8x32xf32>
    %cst_21 = arith.constant dense<0.000000e+00> : vector<32xf32>
    %38 = vector.multi_reduction <add>, %37, %cst_21 [0] : vector<8x32xf32> to vector<32xf32>
    %39 = vector.shape_cast %38 : vector<32xf32> to vector<1x32xf32>
    %cst_22 = arith.constant 8.000000e+00 : f32
    %40 = vector.broadcast %cst_22 : f32 to vector<1x32xf32>
    %41 = arith.divf %39, %40 : vector<1x32xf32>
    %42 = vector.broadcast %41 : vector<1x32xf32> to vector<8x32xf32>
    %43 = arith.subf %37, %42 : vector<8x32xf32>
    %44 = arith.mulf %43, %43 : vector<8x32xf32>
    %cst_23 = arith.constant dense<0.000000e+00> : vector<32xf32>
    %45 = vector.multi_reduction <add>, %44, %cst_23 [0] : vector<8x32xf32> to vector<32xf32>
    %46 = vector.shape_cast %45 : vector<32xf32> to vector<1x32xf32>
    %cst_24 = arith.constant 8.000000e+00 : f32
    %47 = vector.broadcast %cst_24 : f32 to vector<1x32xf32>
    %48 = arith.divf %46, %47 : vector<1x32xf32>
    %c0_25 = arith.constant 0 : index
    %c0_26 = arith.constant 0 : index
    %49 = vector.load %arg7[%c0_25, %c0_26] : memref<1x32xf32, #tpu.memory_space<vmem>>, vector<1x32xf32>
    %cst_27 = arith.constant 9.99999974E-6 : f32
    %50 = vector.broadcast %cst_27 : f32 to vector<1x32xf32>
    %51 = arith.addf %48, %50 : vector<1x32xf32>
    %52 = math.rsqrt %51 : vector<1x32xf32>
    %53 = arith.mulf %49, %52 : vector<1x32xf32>
    %c0_28 = arith.constant 0 : index
    %c0_29 = arith.constant 0 : index
    %54 = vector.load %arg8[%c0_28, %c0_29] : memref<1x32xf32, #tpu.memory_space<vmem>>, vector<1x32xf32>
    %55 = arith.mulf %41, %53 : vector<1x32xf32>
    %56 = arith.subf %54, %55 : vector<1x32xf32>
    %57 = vector.broadcast %53 : vector<1x32xf32> to vector<8x32xf32>
    %58 = arith.mulf %37, %57 : vector<8x32xf32>
    %59 = vector.broadcast %56 : vector<1x32xf32> to vector<8x32xf32>
    %60 = arith.addf %58, %59 : vector<8x32xf32>
    %cst_30 = arith.constant 0.000000e+00 : f32
    %61 = vector.broadcast %cst_30 : f32 to vector<8x32xf32>
    %62 = arith.maximumf %60, %61 : vector<8x32xf32>
    %63 = arith.truncf %62 : vector<8x32xf32> to vector<8x32xbf16>
    %c0_31 = arith.constant 0 : index
    %c0_32 = arith.constant 0 : index
    %64 = vector.load %arg9[%c0_31, %c0_32] : memref<32x128xbf16, #tpu.memory_space<vmem>>, vector<32x128xbf16>
    %cst_33 = arith.constant dense<0.000000e+00> : vector<8x128xf32>
    %65 = tpu.matmul %63, %64, %cst_33 {dimension_numbers = #tpu.dot_dimension_numbers<[1], [0], [0], [1], [0, 0, 1, 1], [], []>} : vector<8x32xbf16>, vector<32x128xbf16>, vector<8x128xf32> -> vector<8x128xf32>
    %c0_34 = arith.constant 0 : index
    %c0_35 = arith.constant 0 : index
    %66 = vector.load %arg10[%c0_34, %c0_35] : memref<1x128xf32, #tpu.memory_space<vmem>>, vector<1x128xf32>
    %67 = vector.broadcast %66 : vector<1x128xf32> to vector<8x128xf32>
    %68 = arith.addf %65, %67 : vector<8x128xf32>
    %69 = arith.mulf %68, %68 : vector<8x128xf32>
    %cst_36 = arith.constant dense<0.000000e+00> : vector<8xf32>
    %70 = vector.multi_reduction <add>, %69, %cst_36 [1] : vector<8x128xf32> to vector<8xf32>
    %71 = vector.shape_cast %70 : vector<8xf32> to vector<8x1xf32>
    %72 = math.rsqrt %71 : vector<8x1xf32>
    %cst_37 = arith.constant 9.99999995E+11 : f32
    %73 = vector.broadcast %cst_37 : f32 to vector<8x1xf32>
    %74 = arith.minimumf %72, %73 : vector<8x1xf32>
    %75 = vector.broadcast %74 : vector<8x1xf32> to vector<8x128xf32>
    %76 = arith.mulf %68, %75 : vector<8x128xf32>
    %c0_38 = arith.constant 0 : index
    %c0_39 = arith.constant 0 : index
    %77 = vector.load %arg21[%c0_38, %c0_39] : memref<8x128xf32, #tpu.memory_space<vmem>>, vector<8x128xf32>
    tpu.vector_store %arg21[%c0_38, %c0_39], %76 {strides = array<i32>} : memref<8x128xf32, #tpu.memory_space<vmem>>, vector<8x128xf32>,
    %c0_40 = arith.constant 0 : index
    %c0_41 = arith.constant 0 : index
    %78 = vector.load %arg11[%c0_40, %c0_41] : memref<32x32xbf16, #tpu.memory_space<vmem>>, vector<32x32xbf16>
    %cst_42 = arith.constant dense<0.000000e+00> : vector<8x32xf32>
    %79 = tpu.matmul %7, %78, %cst_42 {dimension_numbers = #tpu.dot_dimension_numbers<[1], [0], [0], [1], [0, 0, 1, 1], [], []>} : vector<8x32xbf16>, vector<32x32xbf16>, vector<8x32xf32> -> vector<8x32xf32>
    %cst_43 = arith.constant dense<0.000000e+00> : vector<32xf32>
    %80 = vector.multi_reduction <add>, %79, %cst_43 [0] : vector<8x32xf32> to vector<32xf32>
    %81 = vector.shape_cast %80 : vector<32xf32> to vector<1x32xf32>
    %cst_44 = arith.constant 8.000000e+00 : f32
    %82 = vector.broadcast %cst_44 : f32 to vector<1x32xf32>
    %83 = arith.divf %81, %82 : vector<1x32xf32>
    %84 = vector.broadcast %83 : vector<1x32xf32> to vector<8x32xf32>
    %85 = arith.subf %79, %84 : vector<8x32xf32>
    %86 = arith.mulf %85, %85 : vector<8x32xf32>
    %cst_45 = arith.constant dense<0.000000e+00> : vector<32xf32>
    %87 = vector.multi_reduction <add>, %86, %cst_45 [0] : vector<8x32xf32> to vector<32xf32>
    %88 = vector.shape_cast %87 : vector<32xf32> to vector<1x32xf32>
    %cst_46 = arith.constant 8.000000e+00 : f32
    %89 = vector.broadcast %cst_46 : f32 to vector<1x32xf32>
    %90 = arith.divf %88, %89 : vector<1x32xf32>
    %c0_47 = arith.constant 0 : index
    %c0_48 = arith.constant 0 : index
    %91 = vector.load %arg12[%c0_47, %c0_48] : memref<1x32xf32, #tpu.memory_space<vmem>>, vector<1x32xf32>
    %cst_49 = arith.constant 9.99999974E-6 : f32
    %92 = vector.broadcast %cst_49 : f32 to vector<1x32xf32>
    %93 = arith.addf %90, %92 : vector<1x32xf32>
    %94 = math.rsqrt %93 : vector<1x32xf32>
    %95 = arith.mulf %91, %94 : vector<1x32xf32>
    %c0_50 = arith.constant 0 : index
    %c0_51 = arith.constant 0 : index
    %96 = vector.load %arg13[%c0_50, %c0_51] : memref<1x32xf32, #tpu.memory_space<vmem>>, vector<1x32xf32>
    %97 = arith.mulf %83, %95 : vector<1x32xf32>
    %98 = arith.subf %96, %97 : vector<1x32xf32>
    %99 = vector.broadcast %95 : vector<1x32xf32> to vector<8x32xf32>
    %100 = arith.mulf %79, %99 : vector<8x32xf32>
    %101 = vector.broadcast %98 : vector<1x32xf32> to vector<8x32xf32>
    %102 = arith.addf %100, %101 : vector<8x32xf32>
    %cst_52 = arith.constant 0.000000e+00 : f32
    %103 = vector.broadcast %cst_52 : f32 to vector<8x32xf32>
    %104 = arith.maximumf %102, %103 : vector<8x32xf32>
    %105 = arith.truncf %104 : vector<8x32xf32> to vector<8x32xbf16>
    %c0_53 = arith.constant 0 : index
    %c0_54 = arith.constant 0 : index
    %106 = vector.load %arg14[%c0_53, %c0_54] : memref<32x32xbf16, #tpu.memory_space<vmem>>, vector<32x32xbf16>
    %cst_55 = arith.constant dense<0.000000e+00> : vector<8x32xf32>
    %107 = tpu.matmul %105, %106, %cst_55 {dimension_numbers = #tpu.dot_dimension_numbers<[1], [0], [0], [1], [0, 0, 1, 1], [], []>} : vector<8x32xbf16>, vector<32x32xbf16>, vector<8x32xf32> -> vector<8x32xf32>
    %cst_56 = arith.constant dense<0.000000e+00> : vector<32xf32>
    %108 = vector.multi_reduction <add>, %107, %cst_56 [0] : vector<8x32xf32> to vector<32xf32>
    %109 = vector.shape_cast %108 : vector<32xf32> to vector<1x32xf32>
    %cst_57 = arith.constant 8.000000e+00 : f32
    %110 = vector.broadcast %cst_57 : f32 to vector<1x32xf32>
    %111 = arith.divf %109, %110 : vector<1x32xf32>
    %112 = vector.broadcast %111 : vector<1x32xf32> to vector<8x32xf32>
    %113 = arith.subf %107, %112 : vector<8x32xf32>
    %114 = arith.mulf %113, %113 : vector<8x32xf32>
    %cst_58 = arith.constant dense<0.000000e+00> : vector<32xf32>
    %115 = vector.multi_reduction <add>, %114, %cst_58 [0] : vector<8x32xf32> to vector<32xf32>
    %116 = vector.shape_cast %115 : vector<32xf32> to vector<1x32xf32>
    %cst_59 = arith.constant 8.000000e+00 : f32
    %117 = vector.broadcast %cst_59 : f32 to vector<1x32xf32>
    %118 = arith.divf %116, %117 : vector<1x32xf32>
    %c0_60 = arith.constant 0 : index
    %c0_61 = arith.constant 0 : index
    %119 = vector.load %arg15[%c0_60, %c0_61] : memref<1x32xf32, #tpu.memory_space<vmem>>, vector<1x32xf32>
    %cst_62 = arith.constant 9.99999974E-6 : f32
    %120 = vector.broadcast %cst_62 : f32 to vector<1x32xf32>
    %121 = arith.addf %118, %120 : vector<1x32xf32>
    %122 = math.rsqrt %121 : vector<1x32xf32>
    %123 = arith.mulf %119, %122 : vector<1x32xf32>
    %c0_63 = arith.constant 0 : index
    %c0_64 = arith.constant 0 : index
    %124 = vector.load %arg16[%c0_63, %c0_64] : memref<1x32xf32, #tpu.memory_space<vmem>>, vector<1x32xf32>
    %125 = arith.mulf %111, %123 : vector<1x32xf32>
    %126 = arith.subf %124, %125 : vector<1x32xf32>
    %127 = vector.broadcast %123 : vector<1x32xf32> to vector<8x32xf32>
    %128 = arith.mulf %107, %127 : vector<8x32xf32>
    %129 = vector.broadcast %126 : vector<1x32xf32> to vector<8x32xf32>
    %130 = arith.addf %128, %129 : vector<8x32xf32>
    %cst_65 = arith.constant 0.000000e+00 : f32
    %131 = vector.broadcast %cst_65 : f32 to vector<8x32xf32>
    %132 = arith.maximumf %130, %131 : vector<8x32xf32>
    %133 = vector.extract_strided_slice %132 {offsets = [0, 0], sizes = [4, 32], strides = [1, 1]} : vector<8x32xf32> to vector<4x32xf32>
    %134 = arith.truncf %133 : vector<4x32xf32> to vector<4x32xbf16>
    %c0_66 = arith.constant 0 : index
    %c0_67 = arith.constant 0 : index
    %135 = vector.load %arg17[%c0_66, %c0_67] : memref<32x128xbf16, #tpu.memory_space<vmem>>, vector<32x128xbf16>
    %cst_68 = arith.constant dense<0.000000e+00> : vector<4x128xf32>
    %136 = tpu.matmul %134, %135, %cst_68 {dimension_numbers = #tpu.dot_dimension_numbers<[1], [0], [0], [1], [0, 0, 1, 1], [], []>} : vector<4x32xbf16>, vector<32x128xbf16>, vector<4x128xf32> -> vector<4x128xf32>
    %c0_69 = arith.constant 0 : index
    %c0_70 = arith.constant 0 : index
    %137 = vector.load %arg18[%c0_69, %c0_70] : memref<1x128xf32, #tpu.memory_space<vmem>>, vector<1x128xf32>
    %138 = vector.broadcast %137 : vector<1x128xf32> to vector<4x128xf32>
    %139 = arith.addf %136, %138 : vector<4x128xf32>
    %c0_71 = arith.constant 0 : index
    %c0_72 = arith.constant 0 : index
    %140 = vector.load %arg22[%c0_71, %c0_72] : memref<4x128xf32, #tpu.memory_space<vmem>>, vector<4x128xf32>
    tpu.vector_store %arg22[%c0_71, %c0_72], %139 {strides = array<i32>} : memref<4x128xf32, #tpu.memory_space<vmem>>, vector<4x128xf32>,
    %141 = vector.extract_strided_slice %6 {offsets = [4, 0], sizes = [4, 32], strides = [1, 1]} : vector<8x32xf32> to vector<4x32xf32>
    %142 = arith.truncf %141 : vector<4x32xf32> to vector<4x32xbf16>
    %c0_73 = arith.constant 0 : index
    %c0_74 = arith.constant 0 : index
    %143 = vector.load %arg19[%c0_73, %c0_74] : memref<32x128xbf16, #tpu.memory_space<vmem>>, vector<32x128xbf16>
    %cst_75 = arith.constant dense<0.000000e+00> : vector<4x128xf32>
    %144 = tpu.matmul %142, %143, %cst_75 {dimension_numbers = #tpu.dot_dimension_numbers<[1], [0], [0], [1], [0, 0, 1, 1], [], []>} : vector<4x32xbf16>, vector<32x128xbf16>, vector<4x128xf32> -> vector<4x128xf32>
    %c0_76 = arith.constant 0 : index
    %c0_77 = arith.constant 0 : index
    %145 = vector.load %arg20[%c0_76, %c0_77] : memref<1x128xf32, #tpu.memory_space<vmem>>, vector<1x128xf32>
    %146 = vector.broadcast %145 : vector<1x128xf32> to vector<4x128xf32>
    %147 = arith.addf %144, %146 : vector<4x128xf32>
    %c0_78 = arith.constant 0 : index
    %c0_79 = arith.constant 0 : index
    %148 = vector.load %arg23[%c0_78, %c0_79] : memref<4x128xf32, #tpu.memory_space<vmem>>, vector<4x128xf32>
    tpu.vector_store %arg23[%c0_78, %c0_79], %147 {strides = array<i32>} : memref<4x128xf32, #tpu.memory_space<vmem>>, vector<4x128xf32>,
    return
  }
}

</mosaic_0001>

<llo_original>
// kernel: network_forward.1
$region0: #{network_forward.1}
  #allocation0 [shape = 'u32[]', space=smem, size = 0x4, offset = 0x4, fixed_abs, tag = 'smem constant byte address 0x4 - core index']
  #allocation1 [shape = 'u32[144,128]{1,0:T(1,128)}', space=vmem, size = 0x12000, scoped, tag = 'internal scratch']
  %s0 = inlined_call_operand.vmem [shape: f32[8,768], index: 0, kind: input, shape index: {}]
  %s1 = inlined_call_operand.vmem [shape: bf16[768,32], index: 1, kind: input, shape index: {}]
  %s2 = inlined_call_operand.vmem [shape: f32[1,32], index: 2, kind: input, shape index: {}]
  %s3 = inlined_call_operand.vmem [shape: bf16[32,32], index: 3, kind: input, shape index: {}]
  %s4 = inlined_call_operand.vmem [shape: f32[1,32], index: 4, kind: input, shape index: {}]
  %s5 = inlined_call_operand.vmem [shape: f32[1,32], index: 5, kind: input, shape index: {}]
  %s6 = inlined_call_operand.vmem [shape: bf16[32,32], index: 6, kind: input, shape index: {}]
  %s7 = inlined_call_operand.vmem [shape: f32[1,32], index: 7, kind: input, shape index: {}]
  %s8 = inlined_call_operand.vmem [shape: f32[1,32], index: 8, kind: input, shape index: {}]
  %s9 = inlined_call_operand.vmem [shape: bf16[32,128], index: 9, kind: input, shape index: {}]
  %s10 = inlined_call_operand.vmem [shape: f32[1,128], index: 10, kind: input, shape index: {}]
  %s11 = inlined_call_operand.vmem [shape: bf16[32,32], index: 11, kind: input, shape index: {}]
  %s12 = inlined_call_operand.vmem [shape: f32[1,32], index: 12, kind: input, shape index: {}]
  %s13 = inlined_call_operand.vmem [shape: f32[1,32], index: 13, kind: input, shape index: {}]
  %s14 = inlined_call_operand.vmem [shape: bf16[32,32], index: 14, kind: input, shape index: {}]
  %s15 = inlined_call_operand.vmem [shape: f32[1,32], index: 15, kind: input, shape index: {}]
  %s16 = inlined_call_operand.vmem [shape: f32[1,32], index: 16, kind: input, shape index: {}]
  %s17 = inlined_call_operand.vmem [shape: bf16[32,128], index: 17, kind: input, shape index: {}]
  %s18 = inlined_call_operand.vmem [shape: f32[1,128], index: 18, kind: input, shape index: {}]
  %s19 = inlined_call_operand.vmem [shape: bf16[32,128], index: 19, kind: input, shape index: {}]
  %s20 = inlined_call_operand.vmem [shape: f32[1,128], index: 20, kind: input, shape index: {}]
  %s21 = inlined_call_operand.hbm [shape: f32[8,128], index: 21, kind: output, shape index: {0}]
  %s22 = inlined_call_operand.hbm [shape: f32[4,128], index: 22, kind: output, shape index: {1}]
  %s23 = inlined_call_operand.hbm [shape: f32[4,128], index: 23, kind: output, shape index: {2}]
  %24 = xla_tuple %s21, %s22, %s23
  %s25 = sld [smem:[#allocation0]]
  $region110: #{network_forward.1} parent=0
    _
  %s27 = ssub.s32 1, %s25
  %s28 = scalar_select 0, %s27, %s25
  $region1: #{network_forward.1} parent=0
    #allocation2 [shape = 'u8[4096]{0}', space=vmem, size = 0x1000, scoped, tag = 'output window, operand 0, single buffered']
    #allocation3 [shape = 's32[1]{0}', space=sflag, size = 0x4, scoped, tag = 'scoped memory for network_forward.1']
    #allocation4 [shape = 'u8[2048]{0}', space=vmem, size = 0x800, scoped, tag = 'output window, operand 1, single buffered']
    #allocation5 [shape = 's32[1]{0}', space=sflag, size = 0x4, scoped, tag = 'scoped memory for network_forward.1']
    #allocation6 [shape = 'u8[2048]{0}', space=vmem, size = 0x800, scoped, tag = 'output window, operand 2, single buffered']
    %29 = vsyncpa [#allocation3], 0
    %30 = vsyncpa [#allocation5], 0
    // Predicated region
    $region2: #{network_forward.1} parent=1 // pred_check
      _
    $region3: #{network_forward.1} parent=1 // pred_check_branch
      %32 = sbr.rel (0) target = $region5
    $region4: #{network_forward.1} parent=1 // pred_region
      _
    $region5: #{network_forward.1} parent=1 // pred_fallthru
      _
    // Predicated region
    $region6: #{network_forward.1} parent=1 // pred_check
      _
    $region7: #{network_forward.1} parent=1 // pred_check_branch
      %34 = sbr.rel (0) target = $region9
    $region8: #{network_forward.1} parent=1 // pred_region
      _
    $region9: #{network_forward.1} parent=1 // pred_fallthru
      _
    // Predicated region
    $region10: #{network_forward.1} parent=1 // pred_check
      _
    $region11: #{network_forward.1} parent=1 // pred_check_branch
      %36 = sbr.rel (0) target = $region13
    $region12: #{network_forward.1} parent=1 // pred_region
      _
    $region13: #{network_forward.1} parent=1 // pred_fallthru
      _
    // Predicated region
    $region14: #{network_forward.1} parent=1 // pred_check
      _
    $region15: #{network_forward.1} parent=1 // pred_check_branch
      %38 = sbr.rel (0) target = $region17
    $region16: #{network_forward.1} parent=1 // pred_region
      _
    $region17: #{network_forward.1} parent=1 // pred_fallthru
      _
    // Predicated region
    $region18: #{network_forward.1} parent=1 // pred_check
      _
    $region19: #{network_forward.1} parent=1 // pred_check_branch
      %40 = sbr.rel (0) target = $region21
    $region20: #{network_forward.1} parent=1 // pred_region
      _
    $region21: #{network_forward.1} parent=1 // pred_fallthru
      _
    // Predicated region
    $region22: #{network_forward.1} parent=1 // pred_check
      _
    $region23: #{network_forward.1} parent=1 // pred_check_branch
      %42 = sbr.rel (0) target = $region25
    $region24: #{network_forward.1} parent=1 // pred_region
      _
    $region25: #{network_forward.1} parent=1 // pred_fallthru
      _
    // Predicated region
    $region26: #{network_forward.1} parent=1 // pred_check
      _
    $region27: #{network_forward.1} parent=1 // pred_check_branch
      %44 = sbr.rel (0) target = $region29
    $region28: #{network_forward.1} parent=1 // pred_region
      _
    $region29: #{network_forward.1} parent=1 // pred_fallthru
      _
    // Predicated region
    $region30: #{network_forward.1} parent=1 // pred_check
      _
    $region31: #{network_forward.1} parent=1 // pred_check_branch
      %46 = sbr.rel (0) target = $region33
    $region32: #{network_forward.1} parent=1 // pred_region
      _
    $region33: #{network_forward.1} parent=1 // pred_fallthru
      _
    // Predicated region
    $region34: #{network_forward.1} parent=1 // pred_check
      _
    $region35: #{network_forward.1} parent=1 // pred_check_branch
      %48 = sbr.rel (0) target = $region37
    $region36: #{network_forward.1} parent=1 // pred_region
      _
    $region37: #{network_forward.1} parent=1 // pred_fallthru
      _
    // Predicated region
    $region38: #{network_forward.1} parent=1 // pred_check
      _
    $region39: #{network_forward.1} parent=1 // pred_check_branch
      %50 = sbr.rel (0) target = $region41
    $region40: #{network_forward.1} parent=1 // pred_region
      _
    $region41: #{network_forward.1} parent=1 // pred_fallthru
      _
    // Predicated region
    $region42: #{network_forward.1} parent=1 // pred_check
      _
    $region43: #{network_forward.1} parent=1 // pred_check_branch
      %52 = sbr.rel (0) target = $region45
    $region44: #{network_forward.1} parent=1 // pred_region
      _
    $region45: #{network_forward.1} parent=1 // pred_fallthru
      _
    // Predicated region
    $region46: #{network_forward.1} parent=1 // pred_check
      _
    $region47: #{network_forward.1} parent=1 // pred_check_branch
      %54 = sbr.rel (0) target = $region49
    $region48: #{network_forward.1} parent=1 // pred_region
      _
    $region49: #{network_forward.1} parent=1 // pred_fallthru
      _
    // Predicated region
    $region50: #{network_forward.1} parent=1 // pred_check
      _
    $region51: #{network_forward.1} parent=1 // pred_check_branch
      %56 = sbr.rel (0) target = $region53
    $region52: #{network_forward.1} parent=1 // pred_region
      _
    $region53: #{network_forward.1} parent=1 // pred_fallthru
      _
    // Predicated region
    $region54: #{network_forward.1} parent=1 // pred_check
      _
    $region55: #{network_forward.1} parent=1 // pred_check_branch
      %58 = sbr.rel (0) target = $region57
    $region56: #{network_forward.1} parent=1 // pred_region
      _
    $region57: #{network_forward.1} parent=1 // pred_fallthru
      _
    // Predicated region
    $region58: #{network_forward.1} parent=1 // pred_check
      _
    $region59: #{network_forward.1} parent=1 // pred_check_branch
      %60 = sbr.rel (0) target = $region61
    $region60: #{network_forward.1} parent=1 // pred_region
      _
    $region61: #{network_forward.1} parent=1 // pred_fallthru
      _
    // Predicated region
    $region62: #{network_forward.1} parent=1 // pred_check
      _
    $region63: #{network_forward.1} parent=1 // pred_check_branch
      %62 = sbr.rel (0) target = $region65
    $region64: #{network_forward.1} parent=1 // pred_region
      _
    $region65: #{network_forward.1} parent=1 // pred_fallthru
      _
    // Predicated region
    $region66: #{network_forward.1} parent=1 // pred_check
      _
    $region67: #{network_forward.1} parent=1 // pred_check_branch
      %64 = sbr.rel (0) target = $region69
    $region68: #{network_forward.1} parent=1 // pred_region
      _
    $region69: #{network_forward.1} parent=1 // pred_fallthru
      _
    // Predicated region
    $region70: #{network_forward.1} parent=1 // pred_check
      _
    $region71: #{network_forward.1} parent=1 // pred_check_branch
      %66 = sbr.rel (0) target = $region73
    $region72: #{network_forward.1} parent=1 // pred_region
      _
    $region73: #{network_forward.1} parent=1 // pred_fallthru
      _
    // Predicated region
    $region74: #{network_forward.1} parent=1 // pred_check
      _
    $region75: #{network_forward.1} parent=1 // pred_check_branch
      %68 = sbr.rel (0) target = $region77
    $region76: #{network_forward.1} parent=1 // pred_region
      _
    $region77: #{network_forward.1} parent=1 // pred_fallthru
      _
    // Predicated region
    $region78: #{network_forward.1} parent=1 // pred_check
      _
    $region79: #{network_forward.1} parent=1 // pred_check_branch
      %70 = sbr.rel (0) target = $region81
    $region80: #{network_forward.1} parent=1 // pred_region
      _
    $region81: #{network_forward.1} parent=1 // pred_fallthru
      _
    // Predicated region
    $region82: #{network_forward.1} parent=1 // pred_check
      _
    $region83: #{network_forward.1} parent=1 // pred_check_branch
      %72 = sbr.rel (0) target = $region85
    $region84: #{network_forward.1} parent=1 // pred_region
      _
    $region85: #{network_forward.1} parent=1 // pred_fallthru
      _
    %v74 = vld [vmem:[%s0] sm:$0xff]
    %v75 = vld [vmem:[%s0 + $0x8] sm:$0xff]
    %v76 = vld [vmem:[%s0 + $0x10] sm:$0xff]
    %v77 = vld [vmem:[%s0 + $0x18] sm:$0xff]
    %v78 = vld [vmem:[%s0 + $0x20] sm:$0xff]
    %v79 = vld [vmem:[%s0 + $0x28] sm:$0xff]
    %v80 = vpack.c.bf16 %v74, %v74
    %v81 = vpack.c.bf16 %v75, %v75
    %v82 = vpack.c.bf16 %v76, %v76
    %v83 = vpack.c.bf16 %v77, %v77
    %v84 = vpack.c.bf16 %v78, %v78
    %v85 = vpack.c.bf16 %v79, %v79
    %v86 = vld [vmem:[%s1] sm:$0xf]
    %v87 = vld [vmem:[%s1 + $0x4] sm:$0xf]
    %v88 = vld [vmem:[%s1 + $0x8] sm:$0xf]
    %v89 = vld [vmem:[%s1 + $0xc] sm:$0xf]
    %v90 = vld [vmem:[%s1 + $0x10] sm:$0xf]
    %v91 = vld [vmem:[%s1 + $0x14] sm:$0xf]
    %v92 = vld [vmem:[%s1 + $0x18] sm:$0xf]
    %v93 = vld [vmem:[%s1 + $0x1c] sm:$0xf]
    %v94 = vld [vmem:[%s1 + $0x20] sm:$0xf]
    %v95 = vld [vmem:[%s1 + $0x24] sm:$0xf]
    %v96 = vld [vmem:[%s1 + $0x28] sm:$0xf]
    %v97 = vld [vmem:[%s1 + $0x2c] sm:$0xf]
    %v98 = vld [vmem:[%s1 + $0x30] sm:$0xf]
    %v99 = vld [vmem:[%s1 + $0x34] sm:$0xf]
    %v100 = vld [vmem:[%s1 + $0x38] sm:$0xf]
    %v101 = vld [vmem:[%s1 + $0x3c] sm:$0xf]
    %v102 = vld [vmem:[%s1 + $0x40] sm:$0xf]
    %v103 = vld [vmem:[%s1 + $0x44] sm:$0xf]
    %v104 = vld [vmem:[%s1 + $0x48] sm:$0xf]
    %v105 = vld [vmem:[%s1 + $0x4c] sm:$0xf]
    %v106 = vld [vmem:[%s1 + $0x50] sm:$0xf]
    %v107 = vld [vmem:[%s1 + $0x54] sm:$0xf]
    %v108 = vld [vmem:[%s1 + $0x58] sm:$0xf]
    %v109 = vld [vmem:[%s1 + $0x5c] sm:$0xf]
    %v110 = vld [vmem:[%s1 + $0x60] sm:$0xf]
    %v111 = vld [vmem:[%s1 + $0x64] sm:$0xf]
    %v112 = vld [vmem:[%s1 + $0x68] sm:$0xf]
    %v113 = vld [vmem:[%s1 + $0x6c] sm:$0xf]
    %v114 = vld [vmem:[%s1 + $0x70] sm:$0xf]
    %v115 = vld [vmem:[%s1 + $0x74] sm:$0xf]
    %v116 = vld [vmem:[%s1 + $0x78] sm:$0xf]
    %v117 = vld [vmem:[%s1 + $0x7c] sm:$0xf]
    %v118 = vld [vmem:[%s1 + $0x80] sm:$0xf]
    %v119 = vld [vmem:[%s1 + $0x84] sm:$0xf]
    %v120 = vld [vmem:[%s1 + $0x88] sm:$0xf]
    %v121 = vld [vmem:[%s1 + $0x8c] sm:$0xf]
    %v122 = vld [vmem:[%s1 + $0x90] sm:$0xf]
    %v123 = vld [vmem:[%s1 + $0x94] sm:$0xf]
    %v124 = vld [vmem:[%s1 + $0x98] sm:$0xf]
    %v125 = vld [vmem:[%s1 + $0x9c] sm:$0xf]
    %v126 = vld [vmem:[%s1 + $0xa0] sm:$0xf]
    %v127 = vld [vmem:[%s1 + $0xa4] sm:$0xf]
    %v128 = vld [vmem:[%s1 + $0xa8] sm:$0xf]
    %v129 = vld [vmem:[%s1 + $0xac] sm:$0xf]
    %v130 = vld [vmem:[%s1 + $0xb0] sm:$0xf]
    %v131 = vld [vmem:[%s1 + $0xb4] sm:$0xf]
    %v132 = vld [vmem:[%s1 + $0xb8] sm:$0xf]
    %v133 = vld [vmem:[%s1 + $0xbc] sm:$0xf]
    %v134 = vld [vmem:[%s1 + $0xc0] sm:$0xf]
    %v135 = vld [vmem:[%s1 + $0xc4] sm:$0xf]
    %v136 = vld [vmem:[%s1 + $0xc8] sm:$0xf]
    %v137 = vld [vmem:[%s1 + $0xcc] sm:$0xf]
    %v138 = vld [vmem:[%s1 + $0xd0] sm:$0xf]
    %v139 = vld [vmem:[%s1 + $0xd4] sm:$0xf]
    %v140 = vld [vmem:[%s1 + $0xd8] sm:$0xf]
    %v141 = vld [vmem:[%s1 + $0xdc] sm:$0xf]
    %v142 = vld [vmem:[%s1 + $0xe0] sm:$0xf]
    %v143 = vld [vmem:[%s1 + $0xe4] sm:$0xf]
    %v144 = vld [vmem:[%s1 + $0xe8] sm:$0xf]
    %v145 = vld [vmem:[%s1 + $0xec] sm:$0xf]
    %v146 = vld [vmem:[%s1 + $0xf0] sm:$0xf]
    %v147 = vld [vmem:[%s1 + $0xf4] sm:$0xf]
    %v148 = vld [vmem:[%s1 + $0xf8] sm:$0xf]
    %v149 = vld [vmem:[%s1 + $0xfc] sm:$0xf]
    %v150 = vld [vmem:[%s1 + $0x100] sm:$0xf]
    %v151 = vld [vmem:[%s1 + $0x104] sm:$0xf]
    %v152 = vld [vmem:[%s1 + $0x108] sm:$0xf]
    %v153 = vld [vmem:[%s1 + $0x10c] sm:$0xf]
    %v154 = vld [vmem:[%s1 + $0x110] sm:$0xf]
    %v155 = vld [vmem:[%s1 + $0x114] sm:$0xf]
    %v156 = vld [vmem:[%s1 + $0x118] sm:$0xf]
    %v157 = vld [vmem:[%s1 + $0x11c] sm:$0xf]
    %v158 = vld [vmem:[%s1 + $0x120] sm:$0xf]
    %v159 = vld [vmem:[%s1 + $0x124] sm:$0xf]
    %v160 = vld [vmem:[%s1 + $0x128] sm:$0xf]
    %v161 = vld [vmem:[%s1 + $0x12c] sm:$0xf]
    %v162 = vld [vmem:[%s1 + $0x130] sm:$0xf]
    %v163 = vld [vmem:[%s1 + $0x134] sm:$0xf]
    %v164 = vld [vmem:[%s1 + $0x138] sm:$0xf]
    %v165 = vld [vmem:[%s1 + $0x13c] sm:$0xf]
    %v166 = vld [vmem:[%s1 + $0x140] sm:$0xf]
    %v167 = vld [vmem:[%s1 + $0x144] sm:$0xf]
    %v168 = vld [vmem:[%s1 + $0x148] sm:$0xf]
    %v169 = vld [vmem:[%s1 + $0x14c] sm:$0xf]
    %v170 = vld [vmem:[%s1 + $0x150] sm:$0xf]
    %v171 = vld [vmem:[%s1 + $0x154] sm:$0xf]
    %v172 = vld [vmem:[%s1 + $0x158] sm:$0xf]
    %v173 = vld [vmem:[%s1 + $0x15c] sm:$0xf]
    %v174 = vld [vmem:[%s1 + $0x160] sm:$0xf]
    %v175 = vld [vmem:[%s1 + $0x164] sm:$0xf]
    %v176 = vld [vmem:[%s1 + $0x168] sm:$0xf]
    %v177 = vld [vmem:[%s1 + $0x16c] sm:$0xf]
    %v178 = vld [vmem:[%s1 + $0x170] sm:$0xf]
    %v179 = vld [vmem:[%s1 + $0x174] sm:$0xf]
    %v180 = vld [vmem:[%s1 + $0x178] sm:$0xf]
    %v181 = vld [vmem:[%s1 + $0x17c] sm:$0xf]
    %v182 = vld [vmem:[%s2] sm:$0x1]
    %v184 = vlaneseq
    %v185 = vshrl.u32 %v184, 7
    %v186 = vsub.s32 0, %v185
    %v187 = vrot.slane %v182, %v186
    %v285 = vunpack.c.l.b16 %v86
    %v286 = vunpack.c.l.b16 %v87
    %v287 = vunpack.c.l.b16 %v88
    %v288 = vunpack.c.l.b16 %v89
    %v289 = vunpack.c.l.b16 %v90
    %v290 = vunpack.c.l.b16 %v91
    %v291 = vunpack.c.l.b16 %v92
    %v292 = vunpack.c.l.b16 %v93
    %v293 = vunpack.c.l.b16 %v94
    %v294 = vunpack.c.l.b16 %v95
    %v295 = vunpack.c.l.b16 %v96
    %v296 = vunpack.c.l.b16 %v97
    %v297 = vunpack.c.l.b16 %v98
    %v298 = vunpack.c.l.b16 %v99
    %v299 = vunpack.c.l.b16 %v100
    %v300 = vunpack.c.l.b16 %v101
    %v301 = vunpack.c.l.b16 %v102
    %v302 = vunpack.c.l.b16 %v103
    %v303 = vunpack.c.l.b16 %v104
    %v304 = vunpack.c.l.b16 %v105
    %v305 = vunpack.c.l.b16 %v106
    %v306 = vunpack.c.l.b16 %v107
    %v307 = vunpack.c.l.b16 %v108
    %v308 = vunpack.c.l.b16 %v109
    %v309 = vunpack.c.l.b16 %v110
    %v310 = vunpack.c.l.b16 %v111
    %v311 = vunpack.c.l.b16 %v112
    %v312 = vunpack.c.l.b16 %v113
    %v313 = vunpack.c.l.b16 %v114
    %v314 = vunpack.c.l.b16 %v115
    %v315 = vunpack.c.l.b16 %v116
    %v316 = vunpack.c.l.b16 %v117
    %v317 = vunpack.c.l.b16 %v118
    %v318 = vunpack.c.l.b16 %v119
    %v319 = vunpack.c.l.b16 %v120
    %v320 = vunpack.c.l.b16 %v121
    %v321 = vunpack.c.l.b16 %v122
    %v322 = vunpack.c.l.b16 %v123
    %v323 = vunpack.c.l.b16 %v124
    %v324 = vunpack.c.l.b16 %v125
    %v325 = vunpack.c.l.b16 %v126
    %v326 = vunpack.c.l.b16 %v127
    %v327 = vunpack.c.l.b16 %v128
    %v328 = vunpack.c.l.b16 %v129
    %v329 = vunpack.c.l.b16 %v130
    %v330 = vunpack.c.l.b16 %v131
    %v331 = vunpack.c.l.b16 %v132
    %v332 = vunpack.c.l.b16 %v133
    %v333 = vunpack.c.l.b16 %v134
    %v334 = vunpack.c.l.b16 %v135
    %v335 = vunpack.c.l.b16 %v136
    %v336 = vunpack.c.l.b16 %v137
    %v337 = vunpack.c.l.b16 %v138
    %v338 = vunpack.c.l.b16 %v139
    %v339 = vunpack.c.l.b16 %v140
    %v340 = vunpack.c.l.b16 %v141
    %v341 = vunpack.c.l.b16 %v142
    %v342 = vunpack.c.l.b16 %v143
    %v343 = vunpack.c.l.b16 %v144
    %v344 = vunpack.c.l.b16 %v145
    %v345 = vunpack.c.l.b16 %v146
    %v346 = vunpack.c.l.b16 %v147
    %v347 = vunpack.c.l.b16 %v148
    %v348 = vunpack.c.l.b16 %v149
    %v349 = vunpack.c.l.b16 %v150
    %v350 = vunpack.c.l.b16 %v151
    %v351 = vunpack.c.l.b16 %v152
    %v352 = vunpack.c.l.b16 %v153
    %v353 = vunpack.c.l.b16 %v154
    %v354 = vunpack.c.l.b16 %v155
    %v355 = vunpack.c.l.b16 %v156
    %v356 = vunpack.c.l.b16 %v157
    %v357 = vunpack.c.l.b16 %v158
    %v358 = vunpack.c.l.b16 %v159
    %v359 = vunpack.c.l.b16 %v160
    %v360 = vunpack.c.l.b16 %v161
    %v361 = vunpack.c.l.b16 %v162
    %v362 = vunpack.c.l.b16 %v163
    %v363 = vunpack.c.l.b16 %v164
    %v364 = vunpack.c.l.b16 %v165
    %v365 = vunpack.c.l.b16 %v166
    %v366 = vunpack.c.l.b16 %v167
    %v367 = vunpack.c.l.b16 %v168
    %v368 = vunpack.c.l.b16 %v169
    %v369 = vunpack.c.l.b16 %v170
    %v370 = vunpack.c.l.b16 %v171
    %v371 = vunpack.c.l.b16 %v172
    %v372 = vunpack.c.l.b16 %v173
    %v373 = vunpack.c.l.b16 %v174
    %v374 = vunpack.c.l.b16 %v175
    %v375 = vunpack.c.l.b16 %v176
    %v376 = vunpack.c.l.b16 %v177
    %v377 = vunpack.c.l.b16 %v178
    %v378 = vunpack.c.l.b16 %v179
    %v379 = vunpack.c.l.b16 %v180
    %v380 = vunpack.c.l.b16 %v181
    %v381 = vpack.c.b16 %v286, %v285
    %v382 = vpack.c.b16 %v288, %v287
    %v383 = vpack.c.b16 %v290, %v289
    %v384 = vpack.c.b16 %v292, %v291
    %v385 = vpack.c.b16 %v294, %v293
    %v386 = vpack.c.b16 %v296, %v295
    %v387 = vpack.c.b16 %v298, %v297
    %v388 = vpack.c.b16 %v300, %v299
    %v389 = vpack.c.b16 %v302, %v301
    %v390 = vpack.c.b16 %v304, %v303
    %v391 = vpack.c.b16 %v306, %v305
    %v392 = vpack.c.b16 %v308, %v307
    %v393 = vpack.c.b16 %v310, %v309
    %v394 = vpack.c.b16 %v312, %v311
    %v395 = vpack.c.b16 %v314, %v313
    %v396 = vpack.c.b16 %v316, %v315
    %v397 = vpack.c.b16 %v318, %v317
    %v398 = vpack.c.b16 %v320, %v319
    %v399 = vpack.c.b16 %v322, %v321
    %v400 = vpack.c.b16 %v324, %v323
    %v401 = vpack.c.b16 %v326, %v325
    %v402 = vpack.c.b16 %v328, %v327
    %v403 = vpack.c.b16 %v330, %v329
    %v404 = vpack.c.b16 %v332, %v331
    %v405 = vpack.c.b16 %v334, %v333
    %v406 = vpack.c.b16 %v336, %v335
    %v407 = vpack.c.b16 %v338, %v337
    %v408 = vpack.c.b16 %v340, %v339
    %v409 = vpack.c.b16 %v342, %v341
    %v410 = vpack.c.b16 %v344, %v343
    %v411 = vpack.c.b16 %v346, %v345
    %v412 = vpack.c.b16 %v348, %v347
    %v413 = vpack.c.b16 %v350, %v349
    %v414 = vpack.c.b16 %v352, %v351
    %v415 = vpack.c.b16 %v354, %v353
    %v416 = vpack.c.b16 %v356, %v355
    %v417 = vpack.c.b16 %v358, %v357
    %v418 = vpack.c.b16 %v360, %v359
    %v419 = vpack.c.b16 %v362, %v361
    %v420 = vpack.c.b16 %v364, %v363
    %v421 = vpack.c.b16 %v366, %v365
    %v422 = vpack.c.b16 %v368, %v367
    %v423 = vpack.c.b16 %v370, %v369
    %v424 = vpack.c.b16 %v372, %v371
    %v425 = vpack.c.b16 %v374, %v373
    %v426 = vpack.c.b16 %v376, %v375
    %v427 = vpack.c.b16 %v378, %v377
    %v428 = vpack.c.b16 %v380, %v379
    %477 = vmatprep.subr.bf16.mxu0 0
    %478 = vmatpush1.bf16.msra.mxu0 %v388
    %479 = vmatprep.subr.bf16.mxu0 0
    %480 = vmatpush1.bf16.msra.mxu0 %v387
    %481 = vmatprep.subr.bf16.mxu0 0
    %482 = vmatpush1.bf16.msra.mxu0 %v386
    %483 = vmatprep.subr.bf16.mxu0 0
    %484 = vmatpush1.bf16.msra.mxu0 %v385
    %485 = vmatprep.subr.bf16.mxu0 0
    %486 = vmatpush1.bf16.msra.mxu0 %v384
    %487 = vmatprep.subr.bf16.mxu0 0
    %488 = vmatpush1.bf16.msra.mxu0 %v383
    %489 = vmatprep.subr.bf16.mxu0 0
    %490 = vmatpush1.bf16.msra.mxu0 %v382
    %491 = vmatprep.subr.bf16.mxu0 0
    %492 = vmatpush1.bf16.msra.mxu0 %v381
    %493 = vmatprep.subr.bf16.mxu0 0
    %494 = vmatpush2.bf16.msra.mxu0 %v396
    %495 = vmatprep.subr.bf16.mxu0 0
    %496 = vmatpush2.bf16.msra.mxu0 %v395
    %497 = vmatprep.subr.bf16.mxu0 0
    %498 = vmatpush2.bf16.msra.mxu0 %v394
    %499 = vmatprep.subr.bf16.mxu0 0
    %500 = vmatpush2.bf16.msra.mxu0 %v393
    %501 = vmatprep.subr.bf16.mxu0 0
    %502 = vmatpush2.bf16.msra.mxu0 %v392
    %503 = vmatprep.subr.bf16.mxu0 0
    %504 = vmatpush2.bf16.msra.mxu0 %v391
    %505 = vmatprep.subr.bf16.mxu0 0
    %506 = vmatpush2.bf16.msra.mxu0 %v390
    %507 = vmatprep.subr.bf16.mxu0 0
    %508 = vmatpush2.bf16.msra.mxu0 %v389
    %509 = vmatprep.mubr.bf16.mxu0 %v81
    %510 = vmatmul.mubr.bf16.gmra.mxu0 %v80
    %v511 = vpop.f32.mrf.mxu0
    %v512 = vadd.f32 %v187, %v511
    %v513 = vpop.f32.mrf.mxu0
    %v514 = vpop.f32.mrf.mxu0
    %v515 = vpop.f32.mrf.mxu0
    %516 = vdwg.mxu0
    %517 = vmatprep.subr.bf16.mxu0 0
    %518 = vmatpush1.bf16.msra.mxu0 %v404
    %519 = vmatprep.subr.bf16.mxu0 0
    %520 = vmatpush1.bf16.msra.mxu0 %v403
    %521 = vmatprep.subr.bf16.mxu0 0
    %522 = vmatpush1.bf16.msra.mxu0 %v402
    %523 = vmatprep.subr.bf16.mxu0 0
    %524 = vmatpush1.bf16.msra.mxu0 %v401
    %525 = vmatprep.subr.bf16.mxu0 0
    %526 = vmatpush1.bf16.msra.mxu0 %v400
    %527 = vmatprep.subr.bf16.mxu0 0
    %528 = vmatpush1.bf16.msra.mxu0 %v399
    %529 = vmatprep.subr.bf16.mxu0 0
    %530 = vmatpush1.bf16.msra.mxu0 %v398
    %531 = vmatprep.subr.bf16.mxu0 0
    %532 = vmatpush1.bf16.msra.mxu0 %v397
    %533 = vmatprep.subr.bf16.mxu0 0
    %534 = vmatpush2.bf16.msra.mxu0 %v412
    %535 = vmatprep.subr.bf16.mxu0 0
    %536 = vmatpush2.bf16.msra.mxu0 %v411
    %537 = vmatprep.subr.bf16.mxu0 0
    %538 = vmatpush2.bf16.msra.mxu0 %v410
    %539 = vmatprep.subr.bf16.mxu0 0
    %540 = vmatpush2.bf16.msra.mxu0 %v409
    %541 = vmatprep.subr.bf16.mxu0 0
    %542 = vmatpush2.bf16.msra.mxu0 %v408
    %543 = vmatprep.subr.bf16.mxu0 0
    %544 = vmatpush2.bf16.msra.mxu0 %v407
    %545 = vmatprep.subr.bf16.mxu0 0
    %546 = vmatpush2.bf16.msra.mxu0 %v406
    %547 = vmatprep.subr.bf16.mxu0 0
    %548 = vmatpush2.bf16.msra.mxu0 %v405
    %549 = vmatprep.mubr.bf16.mxu0 %v83
    %550 = vmatmul.mubr.bf16.gmra.mxu0 %v82
    %v551 = vpop.f32.mrf.mxu0
    %v552 = vadd.f32 %v512, %v551
    %v553 = vpop.f32.mrf.mxu0
    %v554 = vpop.f32.mrf.mxu0
    %v555 = vpop.f32.mrf.mxu0
    %556 = vdwg.mxu0
    %557 = vmatprep.subr.bf16.mxu0 0
    %558 = vmatpush1.bf16.msra.mxu0 %v420
    %559 = vmatprep.subr.bf16.mxu0 0
    %560 = vmatpush1.bf16.msra.mxu0 %v419
    %561 = vmatprep.subr.bf16.mxu0 0
    %562 = vmatpush1.bf16.msra.mxu0 %v418
    %563 = vmatprep.subr.bf16.mxu0 0
    %564 = vmatpush1.bf16.msra.mxu0 %v417
    %565 = vmatprep.subr.bf16.mxu0 0
    %566 = vmatpush1.bf16.msra.mxu0 %v416
    %567 = vmatprep.subr.bf16.mxu0 0
    %568 = vmatpush1.bf16.msra.mxu0 %v415
    %569 = vmatprep.subr.bf16.mxu0 0
    %570 = vmatpush1.bf16.msra.mxu0 %v414
    %571 = vmatprep.subr.bf16.mxu0 0
    %572 = vmatpush1.bf16.msra.mxu0 %v413
    %573 = vmatprep.subr.bf16.mxu0 0
    %574 = vmatpush2.bf16.msra.mxu0 %v428
    %575 = vmatprep.subr.bf16.mxu0 0
    %576 = vmatpush2.bf16.msra.mxu0 %v427
    %577 = vmatprep.subr.bf16.mxu0 0
    %578 = vmatpush2.bf16.msra.mxu0 %v426
    %579 = vmatprep.subr.bf16.mxu0 0
    %580 = vmatpush2.bf16.msra.mxu0 %v425
    %581 = vmatprep.subr.bf16.mxu0 0
    %582 = vmatpush2.bf16.msra.mxu0 %v424
    %583 = vmatprep.subr.bf16.mxu0 0
    %584 = vmatpush2.bf16.msra.mxu0 %v423
    %585 = vmatprep.subr.bf16.mxu0 0
    %586 = vmatpush2.bf16.msra.mxu0 %v422
    %587 = vmatprep.subr.bf16.mxu0 0
    %588 = vmatpush2.bf16.msra.mxu0 %v421
    %589 = vmatprep.mubr.bf16.mxu0 %v85
    %590 = vmatmul.mubr.bf16.gmra.mxu0 %v84
    %v591 = vpop.f32.mrf.mxu0
    %v592 = vadd.f32 %v552, %v591
    %v593 = vpop.f32.mrf.mxu0
    %v594 = vpop.f32.mrf.mxu0
    %v595 = vpop.f32.mrf.mxu0
    %596 = vdwg.mxu0
    %v597 = vpack.c.bf16 %v592, %v592
    %v598 = vld [vmem:[%s3] sm:$0xf]
    %v599 = vld [vmem:[%s3 + $0x4] sm:$0xf]
    %v600 = vld [vmem:[%s3 + $0x8] sm:$0xf]
    %v601 = vld [vmem:[%s3 + $0xc] sm:$0xf]
    %v606 = vunpack.c.l.b16 %v598
    %v607 = vunpack.c.l.b16 %v599
    %v608 = vunpack.c.l.b16 %v600
    %v609 = vunpack.c.l.b16 %v601
    %v610 = vpack.c.b16 %v607, %v606
    %v611 = vpack.c.b16 %v609, %v608
    %vm614 = vcmask 261120
    %v616 = vsel %vm614, %v597, 0
    %618 = vmatprep.subr.bf16.mxu0 0
    %619 = vmatpush1.bf16.msra.mxu0 0
    %620 = vmatprep.subr.bf16.mxu0 0
    %621 = vmatpush1.bf16.msra.mxu0 0
    %622 = vmatprep.subr.bf16.mxu0 0
    %623 = vmatpush1.bf16.msra.mxu0 0
    %624 = vmatprep.subr.bf16.mxu0 0
    %625 = vmatpush1.bf16.msra.mxu0 0
    %626 = vmatprep.subr.bf16.mxu0 0
    %627 = vmatpush1.bf16.msra.mxu0 0
    %628 = vmatprep.subr.bf16.mxu0 0
    %629 = vmatpush1.bf16.msra.mxu0 0
    %630 = vmatprep.subr.bf16.mxu0 0
    %631 = vmatpush1.bf16.msra.mxu0 %v611
    %632 = vmatprep.subr.bf16.mxu0 0
    %633 = vmatpush1.bf16.msra.mxu0 %v610
    %634 = vmatprep.subr.bf16.mxu0 0
    %635 = vmatpush2.bf16.msra.mxu0 0
    %636 = vmatprep.subr.bf16.mxu0 0
    %637 = vmatpush2.bf16.msra.mxu0 0
    %638 = vmatprep.subr.bf16.mxu0 0
    %639 = vmatpush2.bf16.msra.mxu0 0
    %640 = vmatprep.subr.bf16.mxu0 0
    %641 = vmatpush2.bf16.msra.mxu0 0
    %642 = vmatprep.subr.bf16.mxu0 0
    %643 = vmatpush2.bf16.msra.mxu0 0
    %644 = vmatprep.subr.bf16.mxu0 0
    %645 = vmatpush2.bf16.msra.mxu0 0
    %646 = vmatprep.subr.bf16.mxu0 0
    %647 = vmatpush2.bf16.msra.mxu0 0
    %648 = vmatprep.subr.bf16.mxu0 0
    %649 = vmatpush2.bf16.msra.mxu0 0
    %650 = vmatprep.mubr.bf16.mxu0 0
    %651 = vmatmul.mubr.bf16.gmra.mxu0 %v616
    %v652 = vpop.f32.mrf.mxu0
    %v653 = vadd.f32 0.0, %v652
    %v654 = vpop.f32.mrf.mxu0
    %v655 = vpop.f32.mrf.mxu0
    %v656 = vpop.f32.mrf.mxu0
    %657 = vdwg.mxu0
    %v658 = vsel %vm614, %v653, 0.0
    %v659 = vrot.slane %v658, 4
    %v660 = vadd.f32 %v658, %v659
    %v661 = vrot.slane %v660, 2
    %v662 = vadd.f32 %v660, %v661
    %v663 = vrot.slane %v662, 1
    %v664 = vadd.f32 %v662, %v663
    %v665 = vrcp.pop 8.0
    %v666 = vmul.f32 %v664, %v665
    %v667 = vsub.f32 %v653, %v666
    %v668 = vmul.f32 %v667, %v667
    %v669 = vsel %vm614, %v668, 0.0
    %v670 = vrot.slane %v669, 4
    %v671 = vadd.f32 %v669, %v670
    %v672 = vrot.slane %v671, 2
    %v673 = vadd.f32 %v671, %v672
    %v674 = vrot.slane %v673, 1
    %v675 = vadd.f32 %v673, %v674
    %v676 = vmul.f32 %v675, %v665
    %v677 = vld [vmem:[%s4] sm:$0x1]
    %v678 = vadd.f32 %v676, 1e-05
    %v679 = vrsqrt.pop %v678
    %v680 = vmul.f32 %v677, %v679
    %v681 = vld [vmem:[%s5] sm:$0x1]
    %v682 = vmul.f32 %v666, %v680
    %v683 = vsub.f32 %v681, %v682
    %v685 = vlaneseq
    %v686 = vshrl.u32 %v685, 7
    %v687 = vsub.s32 0, %v686
    %v688 = vrot.slane %v680, %v687
    %v690 = vmul.f32 %v653, %v688
    %v692 = vlaneseq
    %v693 = vshrl.u32 %v692, 7
    %v694 = vsub.s32 0, %v693
    %v695 = vrot.slane %v683, %v694
    %v697 = vadd.f32 %v690, %v695
    %v698 = vmax.f32 %v697, 0.0
    %v699 = vpack.c.bf16 %v698, %v698
    %v700 = vld [vmem:[%s6] sm:$0xf]
    %v701 = vld [vmem:[%s6 + $0x4] sm:$0xf]
    %v702 = vld [vmem:[%s6 + $0x8] sm:$0xf]
    %v703 = vld [vmem:[%s6 + $0xc] sm:$0xf]
    %v708 = vunpack.c.l.b16 %v700
    %v709 = vunpack.c.l.b16 %v701
    %v710 = vunpack.c.l.b16 %v702
    %v711 = vunpack.c.l.b16 %v703
    %v712 = vpack.c.b16 %v709, %v708
    %v713 = vpack.c.b16 %v711, %v710
    %v717 = vsel %vm614, %v699, 0
    %719 = vmatprep.subr.bf16.mxu0 0
    %720 = vmatpush1.bf16.msra.mxu0 0
    %721 = vmatprep.subr.bf16.mxu0 0
    %722 = vmatpush1.bf16.msra.mxu0 0
    %723 = vmatprep.subr.bf16.mxu0 0
    %724 = vmatpush1.bf16.msra.mxu0 0
    %725 = vmatprep.subr.bf16.mxu0 0
    %726 = vmatpush1.bf16.msra.mxu0 0
    %727 = vmatprep.subr.bf16.mxu0 0
    %728 = vmatpush1.bf16.msra.mxu0 0
    %729 = vmatprep.subr.bf16.mxu0 0
    %730 = vmatpush1.bf16.msra.mxu0 0
    %731 = vmatprep.subr.bf16.mxu0 0
    %732 = vmatpush1.bf16.msra.mxu0 %v713
    %733 = vmatprep.subr.bf16.mxu0 0
    %734 = vmatpush1.bf16.msra.mxu0 %v712
    %735 = vmatprep.subr.bf16.mxu0 0
    %736 = vmatpush2.bf16.msra.mxu0 0
    %737 = vmatprep.subr.bf16.mxu0 0
    %738 = vmatpush2.bf16.msra.mxu0 0
    %739 = vmatprep.subr.bf16.mxu0 0
    %740 = vmatpush2.bf16.msra.mxu0 0
    %741 = vmatprep.subr.bf16.mxu0 0
    %742 = vmatpush2.bf16.msra.mxu0 0
    %743 = vmatprep.subr.bf16.mxu0 0
    %744 = vmatpush2.bf16.msra.mxu0 0
    %745 = vmatprep.subr.bf16.mxu0 0
    %746 = vmatpush2.bf16.msra.mxu0 0
    %747 = vmatprep.subr.bf16.mxu0 0
    %748 = vmatpush2.bf16.msra.mxu0 0
    %749 = vmatprep.subr.bf16.mxu0 0
    %750 = vmatpush2.bf16.msra.mxu0 0
    %751 = vmatprep.mubr.bf16.mxu0 0
    %752 = vmatmul.mubr.bf16.gmra.mxu0 %v717
    %v753 = vpop.f32.mrf.mxu0
    %v754 = vadd.f32 0.0, %v753
    %v755 = vpop.f32.mrf.mxu0
    %v756 = vpop.f32.mrf.mxu0
    %v757 = vpop.f32.mrf.mxu0
    %758 = vdwg.mxu0
    %v759 = vsel %vm614, %v754, 0.0
    %v760 = vrot.slane %v759, 4
    %v761 = vadd.f32 %v759, %v760
    %v762 = vrot.slane %v761, 2
    %v763 = vadd.f32 %v761, %v762
    %v764 = vrot.slane %v763, 1
    %v765 = vadd.f32 %v763, %v764
    %v766 = vmul.f32 %v765, %v665
    %v767 = vsub.f32 %v754, %v766
    %v768 = vmul.f32 %v767, %v767
    %v769 = vsel %vm614, %v768, 0.0
    %v770 = vrot.slane %v769, 4
    %v771 = vadd.f32 %v769, %v770
    %v772 = vrot.slane %v771, 2
    %v773 = vadd.f32 %v771, %v772
    %v774 = vrot.slane %v773, 1
    %v775 = vadd.f32 %v773, %v774
    %v776 = vmul.f32 %v775, %v665
    %v777 = vld [vmem:[%s7] sm:$0x1]
    %v778 = vadd.f32 %v776, 1e-05
    %v779 = vrsqrt.pop %v778
    %v780 = vmul.f32 %v777, %v779
    %v781 = vld [vmem:[%s8] sm:$0x1]
    %v782 = vmul.f32 %v766, %v780
    %v783 = vsub.f32 %v781, %v782
    %v785 = vlaneseq
    %v786 = vshrl.u32 %v785, 7
    %v787 = vsub.s32 0, %v786
    %v788 = vrot.slane %v780, %v787
    %v790 = vmul.f32 %v754, %v788
    %v792 = vlaneseq
    %v793 = vshrl.u32 %v792, 7
    %v794 = vsub.s32 0, %v793
    %v795 = vrot.slane %v783, %v794
    %v797 = vadd.f32 %v790, %v795
    %v798 = vmax.f32 %v797, 0.0
    %v799 = vpack.c.bf16 %v798, %v798
    %v800 = vld [vmem:[%s9] sm:$0xf]
    %v801 = vld [vmem:[%s9 + $0x4] sm:$0xf]
    %v802 = vld [vmem:[%s9 + $0x8] sm:$0xf]
    %v803 = vld [vmem:[%s9 + $0xc] sm:$0xf]
    %v804 = vld [vmem:[%s10] sm:$0x1]
    %v806 = vlaneseq
    %v807 = vshrl.u32 %v806, 7
    %v808 = vsub.s32 0, %v807
    %v809 = vrot.slane %v804, %v808
    %v815 = vunpack.c.l.b16 %v800
    %v816 = vunpack.c.l.b16 %v801
    %v817 = vunpack.c.l.b16 %v802
    %v818 = vunpack.c.l.b16 %v803
    %v819 = vpack.c.b16 %v816, %v815
    %v820 = vpack.c.b16 %v818, %v817
    %v824 = vsel %vm614, %v799, 0
    %826 = vmatprep.subr.bf16.mxu0 0
    %827 = vmatpush1.bf16.msra.mxu0 0
    %828 = vmatprep.subr.bf16.mxu0 0
    %829 = vmatpush1.bf16.msra.mxu0 0
    %830 = vmatprep.subr.bf16.mxu0 0
    %831 = vmatpush1.bf16.msra.mxu0 0
    %832 = vmatprep.subr.bf16.mxu0 0
    %833 = vmatpush1.bf16.msra.mxu0 0
    %834 = vmatprep.subr.bf16.mxu0 0
    %835 = vmatpush1.bf16.msra.mxu0 0
    %836 = vmatprep.subr.bf16.mxu0 0
    %837 = vmatpush1.bf16.msra.mxu0 0
    %838 = vmatprep.subr.bf16.mxu0 0
    %839 = vmatpush1.bf16.msra.mxu0 %v820
    %840 = vmatprep.subr.bf16.mxu0 0
    %841 = vmatpush1.bf16.msra.mxu0 %v819
    %842 = vmatprep.subr.bf16.mxu0 0
    %843 = vmatpush2.bf16.msra.mxu0 0
    %844 = vmatprep.subr.bf16.mxu0 0
    %845 = vmatpush2.bf16.msra.mxu0 0
    %846 = vmatprep.subr.bf16.mxu0 0
    %847 = vmatpush2.bf16.msra.mxu0 0
    %848 = vmatprep.subr.bf16.mxu0 0
    %849 = vmatpush2.bf16.msra.mxu0 0
    %850 = vmatprep.subr.bf16.mxu0 0
    %851 = vmatpush2.bf16.msra.mxu0 0
    %852 = vmatprep.subr.bf16.mxu0 0
    %853 = vmatpush2.bf16.msra.mxu0 0
    %854 = vmatprep.subr.bf16.mxu0 0
    %855 = vmatpush2.bf16.msra.mxu0 0
    %856 = vmatprep.subr.bf16.mxu0 0
    %857 = vmatpush2.bf16.msra.mxu0 0
    %858 = vmatprep.mubr.bf16.mxu0 0
    %859 = vmatmul.mubr.bf16.gmra.mxu0 %v824
    %v860 = vpop.f32.mrf.mxu0
    %v861 = vadd.f32 %v809, %v860
    %v862 = vpop.f32.mrf.mxu0
    %v863 = vpop.f32.mrf.mxu0
    %v864 = vpop.f32.mrf.mxu0
    %865 = vdwg.mxu0
    %v866 = vmul.f32 %v861, %v861
    %867 = vadd.xlane.f32.xlu0 %v866
    %v868 = vpop.xlane.xlu0 %867
    %v869 = vrsqrt.pop %v868
    %v870 = vmin.f32 %v869, 1e+12
    %v871 = vmul.f32 %v861, %v870
    %872 = vst [vmem:[#allocation2] sm:$0xff] %v871
    %v873 = vld [vmem:[%s11] sm:$0xf]
    %v874 = vld [vmem:[%s11 + $0x4] sm:$0xf]
    %v875 = vld [vmem:[%s11 + $0x8] sm:$0xf]
    %v876 = vld [vmem:[%s11 + $0xc] sm:$0xf]
    %v881 = vunpack.c.l.b16 %v873
    %v882 = vunpack.c.l.b16 %v874
    %v883 = vunpack.c.l.b16 %v875
    %v884 = vunpack.c.l.b16 %v876
    %v885 = vpack.c.b16 %v882, %v881
    %v886 = vpack.c.b16 %v884, %v883
    %889 = vmatprep.subr.bf16.mxu0 0
    %890 = vmatpush1.bf16.msra.mxu0 0
    %891 = vmatprep.subr.bf16.mxu0 0
    %892 = vmatpush1.bf16.msra.mxu0 0
    %893 = vmatprep.subr.bf16.mxu0 0
    %894 = vmatpush1.bf16.msra.mxu0 0
    %895 = vmatprep.subr.bf16.mxu0 0
    %896 = vmatpush1.bf16.msra.mxu0 0
    %897 = vmatprep.subr.bf16.mxu0 0
    %898 = vmatpush1.bf16.msra.mxu0 0
    %899 = vmatprep.subr.bf16.mxu0 0
    %900 = vmatpush1.bf16.msra.mxu0 0
    %901 = vmatprep.subr.bf16.mxu0 0
    %902 = vmatpush1.bf16.msra.mxu0 %v886
    %903 = vmatprep.subr.bf16.mxu0 0
    %904 = vmatpush1.bf16.msra.mxu0 %v885
    %905 = vmatprep.subr.bf16.mxu0 0
    %906 = vmatpush2.bf16.msra.mxu0 0
    %907 = vmatprep.subr.bf16.mxu0 0
    %908 = vmatpush2.bf16.msra.mxu0 0
    %909 = vmatprep.subr.bf16.mxu0 0
    %910 = vmatpush2.bf16.msra.mxu0 0
    %911 = vmatprep.subr.bf16.mxu0 0
    %912 = vmatpush2.bf16.msra.mxu0 0
    %913 = vmatprep.subr.bf16.mxu0 0
    %914 = vmatpush2.bf16.msra.mxu0 0
    %915 = vmatprep.subr.bf16.mxu0 0
    %916 = vmatpush2.bf16.msra.mxu0 0
    %917 = vmatprep.subr.bf16.mxu0 0
    %918 = vmatpush2.bf16.msra.mxu0 0
    %919 = vmatprep.subr.bf16.mxu0 0
    %920 = vmatpush2.bf16.msra.mxu0 0
    %921 = vmatprep.mubr.bf16.mxu0 0
    %922 = vmatmul.mubr.bf16.gmra.mxu0 %v616
    %v923 = vpop.f32.mrf.mxu0
    %v924 = vadd.f32 0.0, %v923
    %v925 = vpop.f32.mrf.mxu0
    %v926 = vpop.f32.mrf.mxu0
    %v927 = vpop.f32.mrf.mxu0
    %928 = vdwg.mxu0
    %v929 = vsel %vm614, %v924, 0.0
    %v930 = vrot.slane %v929, 4
    %v931 = vadd.f32 %v929, %v930
    %v932 = vrot.slane %v931, 2
    %v933 = vadd.f32 %v931, %v932
    %v934 = vrot.slane %v933, 1
    %v935 = vadd.f32 %v933, %v934
    %v936 = vmul.f32 %v935, %v665
    %v937 = vsub.f32 %v924, %v936
    %v938 = vmul.f32 %v937, %v937
    %v939 = vsel %vm614, %v938, 0.0
    %v940 = vrot.slane %v939, 4
    %v941 = vadd.f32 %v939, %v940
    %v942 = vrot.slane %v941, 2
    %v943 = vadd.f32 %v941, %v942
    %v944 = vrot.slane %v943, 1
    %v945 = vadd.f32 %v943, %v944
    %v946 = vmul.f32 %v945, %v665
    %v947 = vld [vmem:[%s12] sm:$0x1]
    %v948 = vadd.f32 %v946, 1e-05
    %v949 = vrsqrt.pop %v948
    %v950 = vmul.f32 %v947, %v949
    %v951 = vld [vmem:[%s13] sm:$0x1]
    %v952 = vmul.f32 %v936, %v950
    %v953 = vsub.f32 %v951, %v952
    %v955 = vlaneseq
    %v956 = vshrl.u32 %v955, 7
    %v957 = vsub.s32 0, %v956
    %v958 = vrot.slane %v950, %v957
    %v960 = vmul.f32 %v924, %v958
    %v962 = vlaneseq
    %v963 = vshrl.u32 %v962, 7
    %v964 = vsub.s32 0, %v963
    %v965 = vrot.slane %v953, %v964
    %v967 = vadd.f32 %v960, %v965
    %v968 = vmax.f32 %v967, 0.0
    %v969 = vpack.c.bf16 %v968, %v968
    %v970 = vld [vmem:[%s14] sm:$0xf]
    %v971 = vld [vmem:[%s14 + $0x4] sm:$0xf]
    %v972 = vld [vmem:[%s14 + $0x8] sm:$0xf]
    %v973 = vld [vmem:[%s14 + $0xc] sm:$0xf]
    %v978 = vunpack.c.l.b16 %v970
    %v979 = vunpack.c.l.b16 %v971
    %v980 = vunpack.c.l.b16 %v972
    %v981 = vunpack.c.l.b16 %v973
    %v982 = vpack.c.b16 %v979, %v978
    %v983 = vpack.c.b16 %v981, %v980
    %v987 = vsel %vm614, %v969, 0
    %989 = vmatprep.subr.bf16.mxu0 0
    %990 = vmatpush1.bf16.msra.mxu0 0
    %991 = vmatprep.subr.bf16.mxu0 0
    %992 = vmatpush1.bf16.msra.mxu0 0
    %993 = vmatprep.subr.bf16.mxu0 0
    %994 = vmatpush1.bf16.msra.mxu0 0
    %995 = vmatprep.subr.bf16.mxu0 0
    %996 = vmatpush1.bf16.msra.mxu0 0
    %997 = vmatprep.subr.bf16.mxu0 0
    %998 = vmatpush1.bf16.msra.mxu0 0
    %999 = vmatprep.subr.bf16.mxu0 0
    %1000 = vmatpush1.bf16.msra.mxu0 0
    %1001 = vmatprep.subr.bf16.mxu0 0
    %1002 = vmatpush1.bf16.msra.mxu0 %v983
    %1003 = vmatprep.subr.bf16.mxu0 0
    %1004 = vmatpush1.bf16.msra.mxu0 %v982
    %1005 = vmatprep.subr.bf16.mxu0 0
    %1006 = vmatpush2.bf16.msra.mxu0 0
    %1007 = vmatprep.subr.bf16.mxu0 0
    %1008 = vmatpush2.bf16.msra.mxu0 0
    %1009 = vmatprep.subr.bf16.mxu0 0
    %1010 = vmatpush2.bf16.msra.mxu0 0
    %1011 = vmatprep.subr.bf16.mxu0 0
    %1012 = vmatpush2.bf16.msra.mxu0 0
    %1013 = vmatprep.subr.bf16.mxu0 0
    %1014 = vmatpush2.bf16.msra.mxu0 0
    %1015 = vmatprep.subr.bf16.mxu0 0
    %1016 = vmatpush2.bf16.msra.mxu0 0
    %1017 = vmatprep.subr.bf16.mxu0 0
    %1018 = vmatpush2.bf16.msra.mxu0 0
    %1019 = vmatprep.subr.bf16.mxu0 0
    %1020 = vmatpush2.bf16.msra.mxu0 0
    %1021 = vmatprep.mubr.bf16.mxu0 0
    %1022 = vmatmul.mubr.bf16.gmra.mxu0 %v987
    %v1023 = vpop.f32.mrf.mxu0
    %v1024 = vadd.f32 0.0, %v1023
    %v1025 = vpop.f32.mrf.mxu0
    %v1026 = vpop.f32.mrf.mxu0
    %v1027 = vpop.f32.mrf.mxu0
    %1028 = vdwg.mxu0
    %v1029 = vsel %vm614, %v1024, 0.0
    %v1030 = vrot.slane %v1029, 4
    %v1031 = vadd.f32 %v1029, %v1030
    %v1032 = vrot.slane %v1031, 2
    %v1033 = vadd.f32 %v1031, %v1032
    %v1034 = vrot.slane %v1033, 1
    %v1035 = vadd.f32 %v1033, %v1034
    %v1036 = vmul.f32 %v1035, %v665
    %v1037 = vsub.f32 %v1024, %v1036
    %v1038 = vmul.f32 %v1037, %v1037
    %v1039 = vsel %vm614, %v1038, 0.0
    %v1040 = vrot.slane %v1039, 4
    %v1041 = vadd.f32 %v1039, %v1040
    %v1042 = vrot.slane %v1041, 2
    %v1043 = vadd.f32 %v1041, %v1042
    %v1044 = vrot.slane %v1043, 1
    %v1045 = vadd.f32 %v1043, %v1044
    %v1046 = vmul.f32 %v1045, %v665
    %v1047 = vld [vmem:[%s15] sm:$0x1]
    %v1048 = vadd.f32 %v1046, 1e-05
    %v1049 = vrsqrt.pop %v1048
    %v1050 = vmul.f32 %v1047, %v1049
    %v1051 = vld [vmem:[%s16] sm:$0x1]
    %v1052 = vmul.f32 %v1036, %v1050
    %v1053 = vsub.f32 %v1051, %v1052
    %v1055 = vlaneseq
    %v1056 = vshrl.u32 %v1055, 7
    %v1057 = vsub.s32 0, %v1056
    %v1058 = vrot.slane %v1050, %v1057
    %v1060 = vmul.f32 %v1024, %v1058
    %v1062 = vlaneseq
    %v1063 = vshrl.u32 %v1062, 7
    %v1064 = vsub.s32 0, %v1063
    %v1065 = vrot.slane %v1053, %v1064
    %v1067 = vadd.f32 %v1060, %v1065
    %v1068 = vmax.f32 %v1067, 0.0
    %v1069 = vpack.c.bf16 %v1068, %v1068
    %v1070 = vld [vmem:[%s17] sm:$0xf]
    %v1071 = vld [vmem:[%s17 + $0x4] sm:$0xf]
    %v1072 = vld [vmem:[%s17 + $0x8] sm:$0xf]
    %v1073 = vld [vmem:[%s17 + $0xc] sm:$0xf]
    %v1074 = vld [vmem:[%s18] sm:$0x1]
    %v1076 = vlaneseq
    %v1077 = vshrl.u32 %v1076, 7
    %v1078 = vsub.s32 0, %v1077
    %v1079 = vrot.slane %v1074, %v1078
    %v1085 = vunpack.c.l.b16 %v1070
    %v1086 = vunpack.c.l.b16 %v1071
    %v1087 = vunpack.c.l.b16 %v1072
    %v1088 = vunpack.c.l.b16 %v1073
    %v1089 = vpack.c.b16 %v1086, %v1085
    %v1090 = vpack.c.b16 %v1088, %v1087
    %v1094 = vsel %vm614, %v1069, 0
    %1096 = vmatprep.subr.bf16.mxu0 0
    %1097 = vmatpush1.bf16.msra.mxu0 0
    %1098 = vmatprep.subr.bf16.mxu0 0
    %1099 = vmatpush1.bf16.msra.mxu0 0
    %1100 = vmatprep.subr.bf16.mxu0 0
    %1101 = vmatpush1.bf16.msra.mxu0 0
    %1102 = vmatprep.subr.bf16.mxu0 0
    %1103 = vmatpush1.bf16.msra.mxu0 0
    %1104 = vmatprep.subr.bf16.mxu0 0
    %1105 = vmatpush1.bf16.msra.mxu0 0
    %1106 = vmatprep.subr.bf16.mxu0 0
    %1107 = vmatpush1.bf16.msra.mxu0 0
    %1108 = vmatprep.subr.bf16.mxu0 0
    %1109 = vmatpush1.bf16.msra.mxu0 %v1090
    %1110 = vmatprep.subr.bf16.mxu0 0
    %1111 = vmatpush1.bf16.msra.mxu0 %v1089
    %1112 = vmatprep.subr.bf16.mxu0 0
    %1113 = vmatpush2.bf16.msra.mxu0 0
    %1114 = vmatprep.subr.bf16.mxu0 0
    %1115 = vmatpush2.bf16.msra.mxu0 0
    %1116 = vmatprep.subr.bf16.mxu0 0
    %1117 = vmatpush2.bf16.msra.mxu0 0
    %1118 = vmatprep.subr.bf16.mxu0 0
    %1119 = vmatpush2.bf16.msra.mxu0 0
    %1120 = vmatprep.subr.bf16.mxu0 0
    %1121 = vmatpush2.bf16.msra.mxu0 0
    %1122 = vmatprep.subr.bf16.mxu0 0
    %1123 = vmatpush2.bf16.msra.mxu0 0
    %1124 = vmatprep.subr.bf16.mxu0 0
    %1125 = vmatpush2.bf16.msra.mxu0 0
    %1126 = vmatprep.subr.bf16.mxu0 0
    %1127 = vmatpush2.bf16.msra.mxu0 0
    %1128 = vmatprep.mubr.bf16.mxu0 0
    %1129 = vmatmul.mubr.bf16.gmra.mxu0 %v1094
    %v1130 = vpop.f32.mrf.mxu0
    %v1131 = vadd.f32 %v1079, %v1130
    %v1132 = vpop.f32.mrf.mxu0
    %v1133 = vpop.f32.mrf.mxu0
    %v1134 = vpop.f32.mrf.mxu0
    %1135 = vdwg.mxu0
    %1136 = vst [vmem:[#allocation4] sm:$0xf] %v1131
    %v1137 = vld [vmem:[%s19] sm:$0xf]
    %v1138 = vld [vmem:[%s19 + $0x4] sm:$0xf]
    %v1139 = vld [vmem:[%s19 + $0x8] sm:$0xf]
    %v1140 = vld [vmem:[%s19 + $0xc] sm:$0xf]
    %v1141 = vld [vmem:[%s20] sm:$0x1]
    %v1143 = vlaneseq
    %v1144 = vshrl.u32 %v1143, 7
    %v1145 = vsub.s32 0, %v1144
    %v1146 = vrot.slane %v1141, %v1145
    %v1149 = vrot.slane %v597, 2
    %v1154 = vunpack.c.l.b16 %v1137
    %v1155 = vunpack.c.l.b16 %v1138
    %v1156 = vunpack.c.l.b16 %v1139
    %v1157 = vunpack.c.l.b16 %v1140
    %v1158 = vpack.c.b16 %v1155, %v1154
    %v1159 = vpack.c.b16 %v1157, %v1156
    %v1163 = vsel %vm614, %v1149, 0
    %1165 = vmatprep.subr.bf16.mxu0 0
    %1166 = vmatpush1.bf16.msra.mxu0 0
    %1167 = vmatprep.subr.bf16.mxu0 0
    %1168 = vmatpush1.bf16.msra.mxu0 0
    %1169 = vmatprep.subr.bf16.mxu0 0
    %1170 = vmatpush1.bf16.msra.mxu0 0
    %1171 = vmatprep.subr.bf16.mxu0 0
    %1172 = vmatpush1.bf16.msra.mxu0 0
    %1173 = vmatprep.subr.bf16.mxu0 0
    %1174 = vmatpush1.bf16.msra.mxu0 0
    %1175 = vmatprep.subr.bf16.mxu0 0
    %1176 = vmatpush1.bf16.msra.mxu0 0
    %1177 = vmatprep.subr.bf16.mxu0 0
    %1178 = vmatpush1.bf16.msra.mxu0 %v1159
    %1179 = vmatprep.subr.bf16.mxu0 0
    %1180 = vmatpush1.bf16.msra.mxu0 %v1158
    %1181 = vmatprep.subr.bf16.mxu0 0
    %1182 = vmatpush2.bf16.msra.mxu0 0
    %1183 = vmatprep.subr.bf16.mxu0 0
    %1184 = vmatpush2.bf16.msra.mxu0 0
    %1185 = vmatprep.subr.bf16.mxu0 0
    %1186 = vmatpush2.bf16.msra.mxu0 0
    %1187 = vmatprep.subr.bf16.mxu0 0
    %1188 = vmatpush2.bf16.msra.mxu0 0
    %1189 = vmatprep.subr.bf16.mxu0 0
    %1190 = vmatpush2.bf16.msra.mxu0 0
    %1191 = vmatprep.subr.bf16.mxu0 0
    %1192 = vmatpush2.bf16.msra.mxu0 0
    %1193 = vmatprep.subr.bf16.mxu0 0
    %1194 = vmatpush2.bf16.msra.mxu0 0
    %1195 = vmatprep.subr.bf16.mxu0 0
    %1196 = vmatpush2.bf16.msra.mxu0 0
    %1197 = vmatprep.mubr.bf16.mxu0 0
    %1198 = vmatmul.mubr.bf16.gmra.mxu0 %v1163
    %v1199 = vpop.f32.mrf.mxu0
    %v1200 = vadd.f32 %v1146, %v1199
    %v1201 = vpop.f32.mrf.mxu0
    %v1202 = vpop.f32.mrf.mxu0
    %v1203 = vpop.f32.mrf.mxu0
    %1204 = vdwg.mxu0
    %1205 = vst [vmem:[#allocation6] sm:$0xf] %v1200
    // Predicated region
    $region86: #{network_forward.1} parent=1 // pred_check
      _
    $region87: #{network_forward.1} parent=1 // pred_check_branch
      %1207 = sbr.rel (0) target = $region89
    $region88: #{network_forward.1} parent=1 // pred_region
      %s1209 = ssub.s32 128, 128
      %1210 = vsyncadd [#allocation3], %s1209
      %s1212 = sshll.u32 [#allocation2], 4
      %s1213 = int_to_ptr.vmem [resolvable:$true] %s1212
      %1215 = dma.vmem_to_hbm [thread:$0]  %s1213, 128, %s21, [#allocation3]
    $region89: #{network_forward.1} parent=1 // pred_fallthru
      _
    // Predicated region
    $region90: #{network_forward.1} parent=1 // pred_check
      _
    $region91: #{network_forward.1} parent=1 // pred_check_branch
      %1217 = sbr.rel (0) target = $region93
    $region92: #{network_forward.1} parent=1 // pred_region
      %s1219 = ssub.s32 64, 64
      %1220 = vsyncadd [#allocation5], %s1219
      %s1222 = sshll.u32 [#allocation4], 4
      %s1223 = int_to_ptr.vmem [resolvable:$true] %s1222
      %1225 = dma.vmem_to_hbm [thread:$0]  %s1223, 64, %s22, [#allocation5]
    $region93: #{network_forward.1} parent=1 // pred_fallthru
      _
    // Predicated region
    $region94: #{network_forward.1} parent=1 // pred_check
      _
    $region95: #{network_forward.1} parent=1 // pred_check_branch
      %1227 = sbr.rel (0) target = $region97
    $region96: #{network_forward.1} parent=1 // pred_region
      %s1229 = ssub.s32 64, 64
      %1230 = vsyncadd [#allocation5], %s1229
      %s1232 = sshll.u32 [#allocation6], 4
      %s1233 = int_to_ptr.vmem [resolvable:$true] %s1232
      %1235 = dma.vmem_to_hbm [thread:$0]  %s1233, 64, %s23, [#allocation5]
    $region97: #{network_forward.1} parent=1 // pred_fallthru
      _
    // Predicated region
    $region98: #{network_forward.1} parent=1 // pred_check
      _
    $region99: #{network_forward.1} parent=1 // pred_check_branch
      %1237 = sbr.rel (0) target = $region101
    $region100: #{network_forward.1} parent=1 // pred_region
      %1238 = dma.done [#allocation3], 128
    $region101: #{network_forward.1} parent=1 // pred_fallthru
      _
    // Predicated region
    $region102: #{network_forward.1} parent=1 // pred_check
      _
    $region103: #{network_forward.1} parent=1 // pred_check_branch
      %1240 = sbr.rel (0) target = $region105
    $region104: #{network_forward.1} parent=1 // pred_region
      %1241 = dma.done [#allocation5], 64
    $region105: #{network_forward.1} parent=1 // pred_fallthru
      _
    // Predicated region
    $region106: #{network_forward.1} parent=1 // pred_check
      _
    $region107: #{network_forward.1} parent=1 // pred_check_branch
      %1243 = sbr.rel (0) target = $region109
    $region108: #{network_forward.1} parent=1 // pred_region
      %1244 = dma.done [#allocation5], 64
    $region109: #{network_forward.1} parent=1 // pred_fallthru
      _
    %1245 = vsyncpa [#allocation3], 1
    %1246 = vsyncpa [#allocation5], 1

</llo_original>
